<compile_context>
chip_gen: v7x
topology: tpu7x:2x2x1
jax: 0.10.0
libtpu: 0.0.40
codegen_flags: <defaults>
</compile_context>

<pallas_src>
import jax
import jax.numpy as jnp
from jax.experimental import pallas as pl
from jax.experimental.pallas import tpu as pltpu


DEFAULT_BATCH_TILE = 32768  # multiple of 128; ~14.7 MiB double-buffered (f32)


def _round_up(x, m):
    return (x + m - 1) // m * m


# --------------------------------------------------------------------------
# Kernel body (unchanged structure; review called it well designed)
# --------------------------------------------------------------------------
def _context_linear_kernel(xT_ref, ceT_ref, wgen_ref, fused_ref, outT_ref):
    """One batch tile, feature-major: batch lives on the 128-lane axis."""
    cin = xT_ref.shape[0]

    # One fused MXU matmul for both context matrices (they share the RHS):
    #   y[:Cin] = context_reception @ ce^T  -> ctx_rec^T (Cin, TB)
    #   y[Cin:] = context_bias      @ ce^T  -> bias^T    (O,   TB)
    # ce^T stays in its storage dtype (bf16 default) -> native bf16 MXU path
    # on v6e/v7x; accumulation is f32.
    y = jnp.dot(fused_ref[...], ceT_ref[...],
                preferred_element_type=jnp.float32)           # (Cin+O, TB)
    ctx_recT = y[:cin, :]                                     # (Cin, TB) f32
    biasT = y[cin:, :]                                        # (O,   TB) f32

    # x^T is upcast for the VPU multiply (v5e has no bf16 VALU); math stays f32.
    xT = xT_ref[...].astype(jnp.float32)                      # (Cin, TB)

    # Per-sample scalar s[b] = <x[b], ctx_rec[b]>: a sublane reduction whose
    # result already has batch on the lane axis (no transposes anywhere).
    s = jnp.sum(xT * ctx_recT, axis=0, keepdims=True)         # (1, TB)

    # out^T[o, b] = w_gen[o] * s[b] + bias^T[o, b]  -- lane-dense store.
    outT_ref[...] = (wgen_ref[...] * s + biasT).astype(outT_ref.dtype)


# --------------------------------------------------------------------------
# Tiling / VMEM helpers
# --------------------------------------------------------------------------
def _select_batch_tile(batch, batch_tile):
    if batch_tile is not None:
        tb = int(batch_tile)
        if tb >= batch:
            return batch                       # single full block
        if tb % 128 != 0:
            raise ValueError("batch_tile must be a multiple of 128")
        return tb
    if batch <= 128:
        return batch                           # single full block (tiny batch)
    # >= 2 tiles (review #3: feed both v7x TensorCores), 128-aligned (#7),
    # capped at DEFAULT_BATCH_TILE (#2), with an even number of full tiles.
    pairs = max(1, pl.cdiv(batch, 2 * DEFAULT_BATCH_TILE))
    return min(DEFAULT_BATCH_TILE, _round_up(pl.cdiv(batch, 2 * pairs), 128))


def _vmem_limit_bytes(tb, cin, emb, out_ch, act_itemsize, out_itemsize,
                      n_act_bufs):
    """Scoped-VMEM request sized from the real working set (review #6)."""
    def padded_rows(rows, itemsize):
        sub = max(8, 32 // max(1, itemsize))   # f32 -> 8 sublanes, bf16 -> 16
        return _round_up(rows, sub)
    lanes = _round_up(tb, 128)
    act_block = (padded_rows(cin, act_itemsize)
                 + padded_rows(emb, act_itemsize)) * lanes * act_itemsize
    out_block = padded_rows(out_ch, out_itemsize) * lanes * out_itemsize
    need = n_act_bufs * act_block + 2 * out_block + (2 << 20)  # + params/slack
    return max(32 << 20, min(int(need * 1.5), 48 << 20))


# --------------------------------------------------------------------------
# Public entry points
# --------------------------------------------------------------------------
def prepare_context_linear_params(weight_generation, context_reception,
                                  context_bias):
    """Do this once at model init (single fused (Cin+O, E) MXU operand)."""
    wgen_col = jnp.asarray(weight_generation, jnp.float32).reshape(-1, 1)  # (O,1)
    fused = jnp.concatenate(
        [jnp.asarray(context_reception, jnp.float32),
         jnp.asarray(context_bias, jnp.float32)], axis=0)                  # (Cin+O, E)
    return wgen_col, fused


def context_linear_feature_major(xT, ceT, wgen_col, fused, *,
                                 out_dtype=jnp.float32, batch_tile=None,
                                 extra_buffering=False):
    """Zero-plumbing path: xT (Cin, B), ceT (E, B) -> out^T (O, B).

    This is the roofline path the review asks for ("keep activations
    feature-major end-to-end"): no transposes, no padding, no slicing.
    `extra_buffering` adds a 3rd pipeline buffer on the activation streams
    (review #8) -- enable only after a trace shows exposed DMA.
    """
    cin, batch = xT.shape
    emb, batch_ce = ceT.shape
    assert batch_ce == batch, (xT.shape, ceT.shape)
    out_ch = wgen_col.shape[0]
    assert fused.shape == (cin + out_ch, emb), fused.shape

    act_dtype = xT.dtype
    ceT = ceT.astype(act_dtype)
    fused = fused.astype(act_dtype)           # tiny; matches the MXU operand
    wgen_col = wgen_col.astype(jnp.float32)   # used on the VPU in f32

    tb = _select_batch_tile(batch, batch_tile)
    grid = (pl.cdiv(batch, tb),)              # ragged tail handled by Pallas
    out_dtype = jnp.dtype(out_dtype)

    act_kwargs = {"pipeline_mode": pl.Buffered(3)} if extra_buffering else {}
    n_act_bufs = 3 if extra_buffering else 2
    vmem_limit = _vmem_limit_bytes(tb, cin, emb, out_ch,
                                   jnp.dtype(act_dtype).itemsize,
                                   out_dtype.itemsize, n_act_bufs)

    return pl.pallas_call(
        _context_linear_kernel,
        out_shape=jax.ShapeDtypeStruct((out_ch, batch), out_dtype),
        grid=grid,
        in_specs=[
            pl.BlockSpec((cin, tb), lambda i: (0, i), **act_kwargs),  # x^T tile
            pl.BlockSpec((emb, tb), lambda i: (0, i), **act_kwargs),  # ce^T tile
            pl.BlockSpec((out_ch, 1), lambda i: (0, 0)),              # w_gen (resident)
            pl.BlockSpec((cin + out_ch, emb), lambda i: (0, 0)),      # fused params
        ],
        out_specs=pl.BlockSpec((out_ch, tb), lambda i: (0, i)),       # lane-dense out
        compiler_params=pltpu.CompilerParams(
            dimension_semantics=("parallel",),   # shard tiles on v7x's 2 TCs
            vmem_limit_bytes=vmem_limit,
        ),
    )(xT, ceT, wgen_col, fused)


def context_linear(inputs, context_embedding, weight_generation,
                   context_reception, context_bias, *,
                   io_dtype=jnp.bfloat16, out_dtype=jnp.float32,
                   batch_tile=None, extra_buffering=False):
    """Module-compatible wrapper: inputs (B, Cin), ce (B, E) -> (B, O).

    The only wrapper-side data movement is one fused transpose+cast per
    activation (bf16 by default, review #4) and the tiny (O,B)->(B,O)
    transpose of the output.  jnp.pad and post-hoc slicing are gone: the
    ragged batch tail is masked by the kernel's non-divisible grid, so
    padded lanes never reach HBM.
    """
    wgen_col, fused = prepare_context_linear_params(
        weight_generation, context_reception, context_bias)
    act_dtype = jnp.dtype(io_dtype) if io_dtype is not None else inputs.dtype
    xT = inputs.astype(act_dtype).T                   # (Cin, B)
    ceT = context_embedding.astype(act_dtype).T       # (E,   B)
    outT = context_linear_feature_major(
        xT, ceT, wgen_col, fused, out_dtype=out_dtype,
        batch_tile=batch_tile, extra_buffering=extra_buffering)
    return outT.T                                     # (B, O)


# ----------------------------- references ----------------------------------
def context_linear_ref(inputs, context_embedding, weight_generation,
                       context_reception, context_bias):
    """Pure-JAX reference mirroring the PyTorch per-sample loop."""
    ctx_rec = (context_reception @ context_embedding.T).T    # (B, Cin)
    bias = (context_bias @ context_embedding.T).T            # (B, O)
    outs = []
    for b in range(inputs.shape[0]):
        w_b = weight_generation @ ctx_rec[b][None, :]        # (O, Cin)
        outs.append(inputs[b][None, :] @ w_b.T + bias[b])    # (1, O)
    return jnp.concatenate(outs, axis=0)


def context_linear_ref_vec(inputs, context_embedding, weight_generation,
                           context_reception, context_bias):
    ctx_rec = context_embedding @ context_reception.T        # (B, Cin)
    bias = context_embedding @ context_bias.T                # (B, O)
    s = jnp.sum(inputs * ctx_rec, axis=-1, keepdims=True)    # (B, 1)
    return s * weight_generation.reshape(1, -1) + bias


if __name__ == "__main__":
    INPUT_CHANNELS = 16   # Cin
    OUTPUT_CHANNELS = 8   # O
    EMBEDDING_SIZE = 32   # E

    key = jax.random.PRNGKey(0)
    k_x, k_ce, k_wg, k_cr, k_cb, k_x2, k_ce2 = jax.random.split(key, 7)

    weight_generation = 0.1 * jax.random.normal(k_wg, (OUTPUT_CHANNELS, 1), jnp.float32)
    context_reception = 0.1 * jax.random.normal(k_cr, (INPUT_CHANNELS, EMBEDDING_SIZE), jnp.float32)
    context_bias = 0.1 * jax.random.normal(k_cb, (OUTPUT_CHANNELS, EMBEDDING_SIZE), jnp.float32)

    # --- Case 1: tiny batch (as the module's forward implies), exact f32 I/O --
    B = 4
    inputs = jax.random.normal(k_x, (B, INPUT_CHANNELS), jnp.float32)
    ce = jax.random.normal(k_ce, (B, EMBEDDING_SIZE), jnp.float32)

    out = jax.block_until_ready(
        context_linear(inputs, ce, weight_generation, context_reception,
                       context_bias, io_dtype=jnp.float32))
    ref_loop = context_linear_ref(inputs, ce, weight_generation,
                                  context_reception, context_bias)
    ref_vec = context_linear_ref_vec(inputs, ce, weight_generation,
                                     context_reception, context_bias)
    assert out.shape == (B, OUTPUT_CHANNELS), out.shape
    assert jnp.allclose(ref_vec, ref_loop, atol=1e-5, rtol=1e-5)
    assert jnp.allclose(out, ref_loop, atol=1e-4, rtol=1e-4), \
        float(jnp.max(jnp.abs(out - ref_loop)))

    # --- Case 2: ragged batch, defaults (bf16 activation I/O, auto 2-tile grid,
    #             ragged tail handled in-kernel, no pad / no slice), under jit --
    B2 = 300
    inputs2 = jax.random.normal(k_x2, (B2, INPUT_CHANNELS), jnp.float32)
    ce2 = jax.random.normal(k_ce2, (B2, EMBEDDING_SIZE), jnp.float32)

    fast = jax.jit(lambda a, b: context_linear(a, b, weight_generation,
                                               context_reception, context_bias))
    out2 = jax.block_until_ready(fast(inputs2, ce2))

    q = lambda a: a.astype(jnp.bfloat16).astype(jnp.float32)
    ref2 = context_linear_ref_vec(q(inputs2), q(ce2), weight_generation,
                                  q(context_reception), q(context_bias))
    assert out2.shape == (B2, OUTPUT_CHANNELS)
    assert jnp.allclose(out2, ref2, atol=5e-3, rtol=5e-3), \
        float(jnp.max(jnp.abs(out2 - ref2)))

    # --- Case 3: zero-plumbing feature-major entry (production / fused path),
    #             explicit 128-tile -> 3-step grid with a partial last tile ----
    wgen_col, fused = prepare_context_linear_params(
        weight_generation, context_reception, context_bias)
    out3T = jax.block_until_ready(
        context_linear_feature_major(inputs2.T, ce2.T, wgen_col, fused,
                                     batch_tile=128))
    ref3 = context_linear_ref_vec(inputs2, ce2, weight_generation,
                                  context_reception, context_bias)
    assert out3T.shape == (OUTPUT_CHANNELS, B2)
    assert jnp.allclose(out3T.T, ref3, atol=1e-4, rtol=1e-4), \
        float(jnp.max(jnp.abs(out3T.T - ref3)))

    print("KERNEL_OK")
</pallas_src>

<mosaic_0001>
module attributes {stable_mosaic.version = 11 : i64} {
  func.func @_context_linear_kernel(%arg0: i32, %arg1: memref<16x4xf32, #tpu.memory_space<vmem>>, %arg2: memref<32x4xf32, #tpu.memory_space<vmem>>, %arg3: memref<8x1xf32, #tpu.memory_space<vmem>>, %arg4: memref<24x32xf32, #tpu.memory_space<vmem>>, %arg5: memref<8x4xf32, #tpu.memory_space<vmem>>) attributes {dimension_semantics = [#tpu.dimension_semantics<parallel>], iteration_bounds = array<i64: 1>, scalar_prefetch = 0 : i64, scratch_operands = 0 : i64, tpu.core_type = #tpu.core_type<tc>, window_params = [{transform_indices = @transform_0, window_bounds = array<i64: 16, 4>}, {transform_indices = @transform_1, window_bounds = array<i64: 32, 4>}, {pipeline_mode = #tpu.pipeline_mode<synchronous>, transform_indices = @transform_2, window_bounds = array<i64: 8, 1>}, {pipeline_mode = #tpu.pipeline_mode<synchronous>, transform_indices = @transform_3, window_bounds = array<i64: 24, 32>}, {transform_indices = @transform_4, window_bounds = array<i64: 8, 4>}]} {
    %c0 = arith.constant 0 : index
    %c0_0 = arith.constant 0 : index
    %0 = vector.load %arg4[%c0, %c0_0] : memref<24x32xf32, #tpu.memory_space<vmem>>, vector<24x32xf32>
    %c0_1 = arith.constant 0 : index
    %c0_2 = arith.constant 0 : index
    %1 = vector.load %arg2[%c0_1, %c0_2] : memref<32x4xf32, #tpu.memory_space<vmem>>, vector<32x4xf32>
    %cst = arith.constant dense<0.000000e+00> : vector<24x4xf32>
    %2 = tpu.matmul %0, %1, %cst {dimension_numbers = #tpu.dot_dimension_numbers<[1], [0], [0], [1], [0, 0, 1, 1], [], []>} : vector<24x32xf32>, vector<32x4xf32>, vector<24x4xf32> -> vector<24x4xf32>
    %3 = vector.extract_strided_slice %2 {offsets = [0, 0], sizes = [16, 4], strides = [1, 1]} : vector<24x4xf32> to vector<16x4xf32>
    %4 = vector.extract_strided_slice %2 {offsets = [16, 0], sizes = [8, 4], strides = [1, 1]} : vector<24x4xf32> to vector<8x4xf32>
    %c0_3 = arith.constant 0 : index
    %c0_4 = arith.constant 0 : index
    %5 = vector.load %arg1[%c0_3, %c0_4] : memref<16x4xf32, #tpu.memory_space<vmem>>, vector<16x4xf32>
    %6 = arith.mulf %5, %3 : vector<16x4xf32>
    %cst_5 = arith.constant dense<0.000000e+00> : vector<4xf32>
    %7 = vector.multi_reduction <add>, %6, %cst_5 [0] : vector<16x4xf32> to vector<4xf32>
    %8 = vector.shape_cast %7 : vector<4xf32> to vector<1x4xf32>
    %c0_6 = arith.constant 0 : index
    %c0_7 = arith.constant 0 : index
    %9 = vector.load %arg3[%c0_6, %c0_7] : memref<8x1xf32, #tpu.memory_space<vmem>>, vector<8x1xf32>
    %10 = vector.broadcast %9 : vector<8x1xf32> to vector<8x4xf32>
    %11 = vector.broadcast %8 : vector<1x4xf32> to vector<8x4xf32>
    %12 = arith.mulf %10, %11 : vector<8x4xf32>
    %13 = arith.addf %12, %4 : vector<8x4xf32>
    %c0_8 = arith.constant 0 : index
    %c0_9 = arith.constant 0 : index
    %14 = vector.load %arg5[%c0_8, %c0_9] : memref<8x4xf32, #tpu.memory_space<vmem>>, vector<8x4xf32>
    tpu.vector_store %arg5[%c0_8, %c0_9], %13 {strides = array<i32>} : memref<8x4xf32, #tpu.memory_space<vmem>>, vector<8x4xf32>,
    return
  }
  func.func @transform_0(%arg0: i32) -> (i32, i32) {
    %c0_i32 = arith.constant 0 : i32
    %c0_i32_0 = arith.constant 0 : i32
    return %c0_i32, %arg0 : i32, i32
  }
  func.func @transform_1(%arg0: i32) -> (i32, i32) {
    %c0_i32 = arith.constant 0 : i32
    %c0_i32_0 = arith.constant 0 : i32
    return %c0_i32, %arg0 : i32, i32
  }
  func.func @transform_2(%arg0: i32) -> (i32, i32) {
    %c0_i32 = arith.constant 0 : i32
    %c0_i32_0 = arith.constant 0 : i32
    %c0_i32_1 = arith.constant 0 : i32
    return %c0_i32, %c0_i32_0 : i32, i32
  }
  func.func @transform_3(%arg0: i32) -> (i32, i32) {
    %c0_i32 = arith.constant 0 : i32
    %c0_i32_0 = arith.constant 0 : i32
    %c0_i32_1 = arith.constant 0 : i32
    return %c0_i32, %c0_i32_0 : i32, i32
  }
  func.func @transform_4(%arg0: i32) -> (i32, i32) {
    %c0_i32 = arith.constant 0 : i32
    %c0_i32_0 = arith.constant 0 : i32
    return %c0_i32, %arg0 : i32, i32
  }
}

</mosaic_0001>

<llo_original>
// kernel: tpu_custom_call.1
$region0: #{tpu_custom_call.1}
  #allocation0 [shape = 'u32[]', space=smem, size = 0x4, offset = 0x4, fixed_abs, tag = 'smem constant byte address 0x4 - core index']
  #allocation1 [shape = 'u32[144,128]{1,0:T(1,128)}', space=vmem, size = 0x12000, scoped, tag = 'internal scratch']
  %s0 = inlined_call_operand.vmem [shape: f32[16,4], index: 0, kind: input, shape index: {}]
  %s1 = inlined_call_operand.vmem [shape: f32[32,4], index: 1, kind: input, shape index: {}]
  %s2 = inlined_call_operand.vmem [shape: f32[8,1], index: 2, kind: input, shape index: {}]
  %s3 = inlined_call_operand.vmem [shape: f32[24,32], index: 3, kind: input, shape index: {}]
  %s4 = inlined_call_operand.vmem [shape: f32[8,4], index: 4, kind: output, shape index: {}]
  %s5 = sld [smem:[#allocation0]]
  $region26: #{tpu_custom_call.1} parent=0
    _
  %s7 = ssub.s32 1, %s5
  %s8 = scalar_select 0, %s7, %s5
  // Predicated region
  $region2: #{tpu_custom_call.1} parent=0 // pred_check
    _
  $region3: #{tpu_custom_call.1} parent=0 // pred_check_branch
    %10 = sbr.rel (0) target = $region5
  $region4: #{tpu_custom_call.1} parent=0 // pred_region
    _
  $region5: #{tpu_custom_call.1} parent=0 // pred_fallthru
    _
  // Predicated region
  $region6: #{tpu_custom_call.1} parent=0 // pred_check
    _
  $region7: #{tpu_custom_call.1} parent=0 // pred_check_branch
    %12 = sbr.rel (0) target = $region9
  $region8: #{tpu_custom_call.1} parent=0 // pred_region
    _
  $region9: #{tpu_custom_call.1} parent=0 // pred_fallthru
    _
  // Predicated region
  $region10: #{tpu_custom_call.1} parent=0 // pred_check
    _
  $region11: #{tpu_custom_call.1} parent=0 // pred_check_branch
    %14 = sbr.rel (0) target = $region13
  $region12: #{tpu_custom_call.1} parent=0 // pred_region
    _
  $region13: #{tpu_custom_call.1} parent=0 // pred_fallthru
    _
  // Predicated region
  $region14: #{tpu_custom_call.1} parent=0 // pred_check
    _
  $region15: #{tpu_custom_call.1} parent=0 // pred_check_branch
    %16 = sbr.rel (0) target = $region17
  $region16: #{tpu_custom_call.1} parent=0 // pred_region
    _
  $region17: #{tpu_custom_call.1} parent=0 // pred_fallthru
    _
  %v17 = vld [vmem:[%s3] sm:$0xff]
  %v18 = vld [vmem:[%s3 + $0x8] sm:$0xff]
  %v19 = vld [vmem:[%s3 + $0x10] sm:$0xff]
  %v20 = vld [vmem:[%s1] sm:$0xff]
  %v21 = vld [vmem:[%s1 + $0x8] sm:$0xff]
  %v22 = vld [vmem:[%s1 + $0x10] sm:$0xff]
  %v23 = vld [vmem:[%s1 + $0x18] sm:$0xff]
  %vm24 = vcmask 261120
  %v26 = vsel %vm24, %v17, 0
  %v29 = vsel %vm24, %v18, 0
  %v32 = vsel %vm24, %v19, 0
  %34 = vmatprep.subr.mxu0 0.0
  %35 = vmatpush1.msra.mxu0 %v20
  %36 = vmatprep.subr.mxu0 0.0
  %37 = vmatpush1.msra.mxu0 %v21
  %38 = vmatprep.subr.mxu0 0.0
  %39 = vmatpush1.msra.mxu0 %v22
  %40 = vmatprep.subr.mxu0 0.0
  %41 = vmatpush1.msra.mxu0 %v23
  %42 = vmatprep.subr.mxu0 0.0
  %43 = vmatpush1.msra.mxu0 0.0
  %44 = vmatprep.subr.mxu0 0.0
  %45 = vmatpush1.msra.mxu0 0.0
  %46 = vmatprep.subr.mxu0 0.0
  %47 = vmatpush1.msra.mxu0 0.0
  %48 = vmatprep.subr.mxu0 0.0
  %49 = vmatpush1.msra.mxu0 0.0
  %50 = vmatprep.subr.mxu0 0.0
  %51 = vmatpush1.msra.mxu0 0.0
  %52 = vmatprep.subr.mxu0 0.0
  %53 = vmatpush1.msra.mxu0 0.0
  %54 = vmatprep.subr.mxu0 0.0
  %55 = vmatpush1.msra.mxu0 0.0
  %56 = vmatprep.subr.mxu0 0.0
  %57 = vmatpush1.msra.mxu0 0.0
  %58 = vmatprep.subr.mxu0 0.0
  %59 = vmatpush1.msra.mxu0 0.0
  %60 = vmatprep.subr.mxu0 0.0
  %61 = vmatpush1.msra.mxu0 0.0
  %62 = vmatprep.subr.mxu0 0.0
  %63 = vmatpush1.msra.mxu0 0.0
  %64 = vmatprep.subr.mxu0 0.0
  %65 = vmatpush1.msra.mxu0 0.0
  %66 = vmatprep.subr.mxu0 0.0
  %67 = vmatpush1.msra.mxu0 0.0
  %68 = vmatprep.subr.mxu0 0.0
  %69 = vmatpush1.msra.mxu0 0.0
  %70 = vmatprep.subr.mxu0 0.0
  %71 = vmatpush1.msra.mxu0 0.0
  %72 = vmatprep.subr.mxu0 0.0
  %73 = vmatpush1.msra.mxu0 0.0
  %74 = vmatprep.subr.mxu0 0.0
  %75 = vmatpush1.msra.mxu0 0.0
  %76 = vmatprep.subr.mxu0 0.0
  %77 = vmatpush1.msra.mxu0 0.0
  %78 = vmatprep.subr.mxu0 0.0
  %79 = vmatpush1.msra.mxu0 0.0
  %80 = vmatprep.subr.mxu0 0.0
  %81 = vmatpush1.msra.mxu0 0.0
  %82 = vmatprep.subr.mxu0 0.0
  %83 = vmatpush1.msra.mxu0 0.0
  %84 = vmatprep.subr.mxu0 0.0
  %85 = vmatpush1.msra.mxu0 0.0
  %86 = vmatprep.subr.mxu0 0.0
  %87 = vmatpush1.msra.mxu0 0.0
  %88 = vmatprep.subr.mxu0 0.0
  %89 = vmatpush1.msra.mxu0 0.0
  %90 = vmatprep.subr.mxu0 0.0
  %91 = vmatpush1.msra.mxu0 0.0
  %92 = vmatprep.subr.mxu0 0.0
  %93 = vmatpush1.msra.mxu0 0.0
  %94 = vmatprep.subr.mxu0 0.0
  %95 = vmatpush1.msra.mxu0 0.0
  %96 = vmatprep.subr.mxu0 0.0
  %97 = vmatpush1.msra.mxu0 0.0
  %98 = vmatprep.mubr.f32.mxu0 0.0
  %99 = vmatmul.mubr.f32.gmra.mrb[0].mxu0 %v26
  %v100 = vpop.f32.mrb[0].mxu0
  %v101 = vadd.f32 0.0, %v100
  %v102 = vpop.f32.mrb[0].mxu0
  %103 = vmatprep.mubr.f32.mxu0 0.0
  %104 = vmatmul.mubr.f32.gmra.mrb[0].mxu0 %v29
  %v105 = vpop.f32.mrb[0].mxu0
  %v106 = vadd.f32 0.0, %v105
  %v107 = vpop.f32.mrb[0].mxu0
  %108 = vmatprep.mubr.f32.mxu0 0.0
  %109 = vmatmul.mubr.f32.gmra.mrb[0].mxu0 %v32
  %v110 = vpop.f32.mrb[0].mxu0
  %v111 = vadd.f32 0.0, %v110
  %v112 = vpop.f32.mrb[0].mxu0
  %113 = vdwg.mxu0
  %v114 = vld [vmem:[%s0] sm:$0xff]
  %v115 = vld [vmem:[%s0 + $0x8] sm:$0xff]
  %v116 = vmul.f32 %v114, %v101
  %v117 = vmul.f32 %v115, %v106
  %vm118 = vcmask 31744
  %v119 = vsel %vm118, %v116, 0.0
  %v120 = vsel %vm118, %v117, 0.0
  %v121 = vadd.f32 %v119, %v120
  %v122 = vrot.slane %v121, 4
  %v123 = vadd.f32 %v121, %v122
  %v124 = vrot.slane %v123, 2
  %v125 = vadd.f32 %v123, %v124
  %v126 = vrot.slane %v125, 1
  %v127 = vadd.f32 %v125, %v126
  %v128 = vld [vmem:[%s2] sm:$0xff]
  %130 = vset.pattern.permute.xlu0 0
  %131 = vperm.xlu0 %130, %v128
  %v132 = vpop.permute.xlu0 %131
  %v134 = vmul.f32 %v132, %v127
  %v135 = vadd.f32 %v134, %v111
  %136 = vst.msk [vmem:[%s4] sm:$0xff] %vm118, %v135
  // Predicated region
  $region18: #{tpu_custom_call.1} parent=0 // pred_check
    _
  $region19: #{tpu_custom_call.1} parent=0 // pred_check_branch
    %138 = sbr.rel (0) target = $region21
  $region20: #{tpu_custom_call.1} parent=0 // pred_region
    _
  $region21: #{tpu_custom_call.1} parent=0 // pred_fallthru
    _
  // Predicated region
  $region22: #{tpu_custom_call.1} parent=0 // pred_check
    _
  $region23: #{tpu_custom_call.1} parent=0 // pred_check_branch
    %140 = sbr.rel (0) target = $region25
  $region24: #{tpu_custom_call.1} parent=0 // pred_region
    _
  $region25: #{tpu_custom_call.1} parent=0 // pred_fallthru
    _

</llo_original>
